<compile_context>
chip_gen: v7x
topology: tpu7x:2x2x1
jax: 0.10.0
libtpu: 0.0.40
codegen_flags: <defaults>
</compile_context>

<pallas_src>
import math

import jax
import jax.numpy as jnp
from jax.experimental import pallas as pl
from jax.experimental.pallas import tpu as pltpu


_LANE = 128
_VMEM_LIMIT_CAP = 48 * 1024 * 1024        # scoped-VMEM cap, safe on v7x (64 MiB physical)
_RESIDENT_BUDGET = 40 * 1024 * 1024       # working-set budget for the weight-resident path
_RESIDENT_WEIGHT_BYTES = 20 * 1024 * 1024  # prep-time threshold: keep K unpadded below this


def _round_up(x, m):
    return ((x + m - 1) // m) * m


def _largest_tile(total, cap):
    """Largest divisor of `total` that is a multiple of 128 and <= cap, or `total`
    itself if it already fits.  `total` is a multiple of 128."""
    if total <= cap:
        return total
    best = _LANE
    t = _LANE
    while t <= cap:
        if total % t == 0:
            best = t
        t += _LANE
    return best


def _linear_kernel(x_ref, wt_ref, b_ref, o_ref):
    """Single-K-step path: no accumulator scratch, no pl.when branches.
    x_ref: [tm, K]  wt_ref: [K, tn]  b_ref: [1, tn] (f32)  o_ref: [tm, tn]."""
    acc = jnp.dot(x_ref[...].astype(wt_ref.dtype), wt_ref[...],
                  preferred_element_type=jnp.float32)
    o_ref[...] = (acc + b_ref[...]).astype(o_ref.dtype)


def _linear_kernel_ktiled(x_ref, wt_ref, b_ref, o_ref, acc_ref):
    """K-tiled fallback (very large weights).  Bias folded into accumulator init."""
    k = pl.program_id(2)

    @pl.when(k == 0)
    def _():
        acc_ref[...] = jnp.broadcast_to(b_ref[...], acc_ref.shape)

    acc_ref[...] += jnp.dot(x_ref[...].astype(wt_ref.dtype), wt_ref[...],
                            preferred_element_type=jnp.float32)

    @pl.when(k == pl.num_programs(2) - 1)
    def _():
        o_ref[...] = acc_ref[...].astype(o_ref.dtype)


def prepare_bic_params(weight, bias, *, compute_dtype=jnp.bfloat16):
    """One-time weight prep (call OUTSIDE the hot path).

    W [num_classes, in_features] -> W^T [K, nc_pad] in `compute_dtype` with a
    lane-dense 128-aligned class axis.  K is left unpadded unless the weight is
    too large to keep VMEM-resident (then the forward pass uses K tiling and K
    is padded to a multiple of 128 too).  Bias stays f32 (epilogue runs in f32).
    """
    num_classes, in_features = weight.shape
    nc_pad = _round_up(num_classes, _LANE)
    wt = weight.T.astype(compute_dtype)

    w_item = jnp.dtype(compute_dtype).itemsize
    if in_features * nc_pad * w_item > _RESIDENT_WEIGHT_BYTES:
        in_pad = _round_up(in_features, _LANE)   # huge weight -> K-tiled fallback
    else:
        in_pad = in_features                     # full-K block: no K / x padding needed

    if wt.shape != (in_pad, nc_pad):
        wt = jnp.pad(wt, ((0, in_pad - in_features), (0, nc_pad - num_classes)))

    b = bias.astype(jnp.float32).reshape(1, num_classes)
    if nc_pad != num_classes:
        b = jnp.pad(b, ((0, 0), (0, nc_pad - num_classes)))
    return wt, b


def bic_classifier_forward_prepared(x, wt, b, num_classes, *, tm=None, tn=None, tk=None):
    """x: [B, in_features]; wt: [K(_pad), NC_pad] (compute dtype); b: [1, NC_pad] (f32)."""
    B, in_features = x.shape
    k_pad, nc_pad = wt.shape
    out_dtype = x.dtype

    x_item = jnp.dtype(x.dtype).itemsize
    w_item = jnp.dtype(wt.dtype).itemsize
    o_item = jnp.dtype(out_dtype).itemsize

    # Sublane alignment for the row tile (8 rows/vreg at 32-bit, 16 at 16-bit, ...).
    sub = 8 * max(1, 4 // max(1, x_item))
    if tm is None:
        tm = min(512, _round_up(B, sub))
    tm = _round_up(tm, sub)

    if k_pad == in_features:
        # ---------------- full-K path: no reduction axis, no accumulator -------------
        fixed = 2 * nc_pad * 4                                 # bias
        w_res = 2 * k_pad * nc_pad * w_item                    # resident W^T (conservative)
        tiles = 2 * tm * (k_pad * x_item + nc_pad * o_item)    # double-buffered x/out tiles
        if tn is None:
            tn = nc_pad if (fixed + w_res + tiles <= _RESIDENT_BUDGET) \
                else _largest_tile(nc_pad, 512)

        if tn == nc_pad:
            # Weight-resident: constant index_map -> W^T is DMA'd from HBM exactly once.
            grid = (pl.cdiv(B, tm),)
            in_specs = [pl.BlockSpec((tm, k_pad), lambda i: (i, 0)),
                        pl.BlockSpec((k_pad, nc_pad), lambda i: (0, 0)),
                        pl.BlockSpec((1, nc_pad), lambda i: (0, 0))]
            out_specs = pl.BlockSpec((tm, nc_pad), lambda i: (i, 0))
            semantics = ("parallel",)
        else:
            grid = (pl.cdiv(B, tm), nc_pad // tn)
            in_specs = [pl.BlockSpec((tm, k_pad), lambda i, j: (i, 0)),
                        pl.BlockSpec((k_pad, tn), lambda i, j: (0, j)),
                        pl.BlockSpec((1, tn), lambda i, j: (0, j))]
            out_specs = pl.BlockSpec((tm, tn), lambda i, j: (i, j))
            semantics = ("parallel", "parallel")

        kernel = _linear_kernel
        scratch = []
        x_in = x
        vmem_need = (2 * tm * k_pad * x_item + 2 * k_pad * tn * w_item
                     + 2 * tn * 4 + 2 * tm * tn * o_item)
    else:
        # ---------------- K-tiled fallback (very large weight) -----------------------
        in_pad = k_pad
        x_in = jnp.pad(x, ((0, 0), (0, in_pad - in_features))) if in_pad != in_features else x
        if tn is None:
            tn = _largest_tile(nc_pad, 512)
        if tk is None:
            tk = _largest_tile(in_pad, 512)
        grid = (pl.cdiv(B, tm), nc_pad // tn, in_pad // tk)
        in_specs = [pl.BlockSpec((tm, tk), lambda i, j, k: (i, k)),
                    pl.BlockSpec((tk, tn), lambda i, j, k: (k, j)),
                    pl.BlockSpec((1, tn), lambda i, j, k: (0, j))]
        out_specs = pl.BlockSpec((tm, tn), lambda i, j, k: (i, j))
        semantics = ("parallel", "parallel", "arbitrary")
        kernel = _linear_kernel_ktiled
        scratch = [pltpu.VMEM((tm, tn), jnp.float32)]
        vmem_need = (2 * tm * tk * x_item + 2 * tk * tn * w_item
                     + 2 * tn * 4 + 2 * tm * tn * o_item + tm * tn * 4)

    vmem_limit = int(min(_VMEM_LIMIT_CAP,
                         max(4 * 1024 * 1024, (vmem_need * 5) // 4)))

    cost = pl.CostEstimate(
        flops=2 * B * k_pad * nc_pad,
        bytes_accessed=int(x_in.size * x_item + wt.size * w_item
                           + b.size * 4 + B * nc_pad * o_item),
        transcendentals=0,
    )

    out = pl.pallas_call(
        kernel,
        out_shape=jax.ShapeDtypeStruct((B, nc_pad), out_dtype),
        grid_spec=pltpu.PrefetchScalarGridSpec(
            num_scalar_prefetch=0,
            grid=grid,
            in_specs=in_specs,
            out_specs=out_specs,
            scratch_shapes=scratch),
        compiler_params=pltpu.CompilerParams(
            dimension_semantics=semantics,
            vmem_limit_bytes=vmem_limit),
        cost_estimate=cost,
    )(x_in, wt, b)

    if nc_pad != num_classes:
        out = out[:, :num_classes]
    return out


def bic_classifier_forward(x, weight, bias, *, compute_dtype=jnp.bfloat16,
                           tm=None, tn=None, tk=None):
    """Convenience wrapper.  For hot loops, call prepare_bic_params once and reuse
    its outputs with bic_classifier_forward_prepared."""
    wt, b = prepare_bic_params(weight, bias, compute_dtype=compute_dtype)
    return bic_classifier_forward_prepared(x, wt, b, weight.shape[0],
                                           tm=tm, tn=tn, tk=tk)


def init_bic_classifier_params(key, in_features, num_classes, dtype=jnp.float32):
    """Deterministic init mimicking torch.nn.Linear defaults."""
    kw, kb = jax.random.split(key)
    limit = 1.0 / math.sqrt(in_features)
    weight = jax.random.uniform(
        kw, (num_classes, in_features), dtype=dtype, minval=-limit, maxval=limit)
    bias = jax.random.uniform(
        kb, (num_classes,), dtype=dtype, minval=-limit, maxval=limit)
    return weight, bias


if __name__ == "__main__":
    key = jax.random.PRNGKey(0)
    k_x, k_p, k_x2, k_p2 = jax.random.split(key, 4)

    # --- Case 1: small shape matching the module, exact f32 path ----------------
    B, IN, NC = 8, 32, 16
    x = jax.random.normal(k_x, (B, IN), dtype=jnp.float32)
    w, b = init_bic_classifier_params(k_p, IN, NC)

    wt32, bp32 = prepare_bic_params(w, b, compute_dtype=jnp.float32)  # one-time prep
    out = jax.block_until_ready(bic_classifier_forward_prepared(x, wt32, bp32, NC))
    ref = x @ w.T + b
    assert out.shape == (B, NC)
    assert jnp.allclose(out, ref, atol=1e-5, rtol=1e-5)

    # --- Case 2: non-aligned shapes, default bf16 weights (recommended) ---------
    B2, IN2, NC2 = 16, 96, 40
    x2 = jax.random.normal(k_x2, (B2, IN2), dtype=jnp.float32)
    w2, b2 = init_bic_classifier_params(k_p2, IN2, NC2)
    out2 = jax.block_until_ready(bic_classifier_forward(x2, w2, b2))
    ref2 = x2 @ w2.T + b2
    assert out2.shape == (B2, NC2)
    assert jnp.allclose(out2, ref2, atol=5e-2, rtol=5e-2)

    # Note: bias_layer is None in the PyTorch module, so the eval-time bias
    # correction branch is a no-op and is intentionally not implemented.
    print("KERNEL_OK")
</pallas_src>

<mosaic_0001>
module attributes {stable_mosaic.version = 11 : i64} {
  func.func @_linear_kernel(%arg0: i32, %arg1: memref<8x32xf32, #tpu.memory_space<vmem>>, %arg2: memref<32x128xf32, #tpu.memory_space<vmem>>, %arg3: memref<1x128xf32, #tpu.memory_space<vmem>>, %arg4: memref<8x128xf32, #tpu.memory_space<vmem>>) attributes {dimension_semantics = [#tpu.dimension_semantics<parallel>], iteration_bounds = array<i64: 1>, scalar_prefetch = 0 : i64, scratch_operands = 0 : i64, tpu.core_type = #tpu.core_type<tc>, window_params = [{transform_indices = @transform_0, window_bounds = array<i64: 8, 32>}, {pipeline_mode = #tpu.pipeline_mode<synchronous>, transform_indices = @transform_1, window_bounds = array<i64: 32, 128>}, {pipeline_mode = #tpu.pipeline_mode<synchronous>, transform_indices = @transform_2, window_bounds = array<i64: 1, 128>}, {transform_indices = @transform_3, window_bounds = array<i64: 8, 128>}]} {
    %c0 = arith.constant 0 : index
    %c0_0 = arith.constant 0 : index
    %0 = vector.load %arg1[%c0, %c0_0] : memref<8x32xf32, #tpu.memory_space<vmem>>, vector<8x32xf32>
    %c0_1 = arith.constant 0 : index
    %c0_2 = arith.constant 0 : index
    %1 = vector.load %arg2[%c0_1, %c0_2] : memref<32x128xf32, #tpu.memory_space<vmem>>, vector<32x128xf32>
    %cst = arith.constant dense<0.000000e+00> : vector<8x128xf32>
    %2 = tpu.matmul %0, %1, %cst {dimension_numbers = #tpu.dot_dimension_numbers<[1], [0], [0], [1], [0, 0, 1, 1], [], []>} : vector<8x32xf32>, vector<32x128xf32>, vector<8x128xf32> -> vector<8x128xf32>
    %c0_3 = arith.constant 0 : index
    %c0_4 = arith.constant 0 : index
    %3 = vector.load %arg3[%c0_3, %c0_4] : memref<1x128xf32, #tpu.memory_space<vmem>>, vector<1x128xf32>
    %4 = vector.broadcast %3 : vector<1x128xf32> to vector<8x128xf32>
    %5 = arith.addf %2, %4 : vector<8x128xf32>
    %c0_5 = arith.constant 0 : index
    %c0_6 = arith.constant 0 : index
    %6 = vector.load %arg4[%c0_5, %c0_6] : memref<8x128xf32, #tpu.memory_space<vmem>>, vector<8x128xf32>
    tpu.vector_store %arg4[%c0_5, %c0_6], %5 {strides = array<i32>} : memref<8x128xf32, #tpu.memory_space<vmem>>, vector<8x128xf32>,
    return
  }
  func.func @transform_0(%arg0: i32) -> (i32, i32) {
    %c0_i32 = arith.constant 0 : i32
    %c0_i32_0 = arith.constant 0 : i32
    return %arg0, %c0_i32 : i32, i32
  }
  func.func @transform_1(%arg0: i32) -> (i32, i32) {
    %c0_i32 = arith.constant 0 : i32
    %c0_i32_0 = arith.constant 0 : i32
    %c0_i32_1 = arith.constant 0 : i32
    return %c0_i32, %c0_i32_0 : i32, i32
  }
  func.func @transform_2(%arg0: i32) -> (i32, i32) {
    %c0_i32 = arith.constant 0 : i32
    %c0_i32_0 = arith.constant 0 : i32
    %c0_i32_1 = arith.constant 0 : i32
    return %c0_i32, %c0_i32_0 : i32, i32
  }
  func.func @transform_3(%arg0: i32) -> (i32, i32) {
    %c0_i32 = arith.constant 0 : i32
    %c0_i32_0 = arith.constant 0 : i32
    return %arg0, %c0_i32 : i32, i32
  }
}

</mosaic_0001>

<llo_original>
// kernel: tpu_custom_call.1
$region0: #{tpu_custom_call.1}
  #allocation0 [shape = 'u32[]', space=smem, size = 0x4, offset = 0x4, fixed_abs, tag = 'smem constant byte address 0x4 - core index']
  #allocation1 [shape = 'u32[144,128]{1,0:T(1,128)}', space=vmem, size = 0x12000, scoped, tag = 'internal scratch']
  %s0 = inlined_call_operand.hbm [shape: f32[8,32], index: 0, kind: input, shape index: {}]
  %s1 = inlined_call_operand.hbm [shape: f32[32,128], index: 1, kind: input, shape index: {}]
  %s2 = inlined_call_operand.vmem [shape: f32[1,128], index: 2, kind: input, shape index: {}]
  %s3 = inlined_call_operand.hbm [shape: f32[8,128], index: 3, kind: output, shape index: {}]
  %s4 = sld [smem:[#allocation0]]
  $region30: #{tpu_custom_call.1} parent=0
    _
  %s6 = ssub.s32 1, %s4
  %s7 = scalar_select 0, %s6, %s4
  $region1: #{tpu_custom_call.1} parent=0
    #allocation2 [shape = 'u8[4096]{0}', space=vmem, size = 0x1000, scoped, tag = 'input window, operand 0, single buffered']
    #allocation3 [shape = 's32[1]{0}', space=sflag, size = 0x4, scoped, tag = 'scoped memory for tpu_custom_call.1']
    #allocation4 [shape = 's32[1]{0}', space=sflag, size = 0x4, scoped, tag = 'scoped memory for tpu_custom_call.1']
    #allocation5 [shape = 'u8[16384]{0}', space=vmem, size = 0x4000, scoped, tag = 'input window, operand 1, single buffered']
    #allocation6 [shape = 's32[1]{0}', space=sflag, size = 0x4, scoped, tag = 'scoped memory for tpu_custom_call.1']
    #allocation7 [shape = 'u8[4096]{0}', space=vmem, size = 0x1000, scoped, tag = 'output window, operand 0, single buffered']
    %8 = vsyncpa [#allocation3], 0
    %9 = vsyncpa [#allocation6], 0
    %10 = vsyncpa [#allocation4], 0
    // Predicated region
    $region2: #{tpu_custom_call.1} parent=1 // pred_check
      _
    $region3: #{tpu_custom_call.1} parent=1 // pred_check_branch
      %12 = sbr.rel (0) target = $region5
    $region4: #{tpu_custom_call.1} parent=1 // pred_region
      %s14 = ssub.s32 128, 128
      %15 = vsyncadd [#allocation3], %s14
      %s17 = sshll.u32 [#allocation2], 4
      %s18 = int_to_ptr.vmem [resolvable:$true] %s17
      %20 = dma.hbm_to_vmem [thread:$0]  %s0, 128, %s18, [#allocation3]
    $region5: #{tpu_custom_call.1} parent=1 // pred_fallthru
      _
    // Predicated region
    $region6: #{tpu_custom_call.1} parent=1 // pred_check
      _
    $region7: #{tpu_custom_call.1} parent=1 // pred_check_branch
      %22 = sbr.rel (0) target = $region9
    $region8: #{tpu_custom_call.1} parent=1 // pred_region
      %s24 = ssub.s32 512, 512
      %25 = vsyncadd [#allocation6], %s24
      %s26 = sshll.u32 [#allocation5], 4
      %s27 = int_to_ptr.vmem [resolvable:$true] %s26
      %32 = dma.hbm_to_vmem [thread:$0]  %s1, 512, %s27, [#allocation6], 128, 128, 8
    $region9: #{tpu_custom_call.1} parent=1 // pred_fallthru
      _
    // Predicated region
    $region10: #{tpu_custom_call.1} parent=1 // pred_check
      _
    $region11: #{tpu_custom_call.1} parent=1 // pred_check_branch
      %34 = sbr.rel (0) target = $region13
    $region12: #{tpu_custom_call.1} parent=1 // pred_region
      _
    $region13: #{tpu_custom_call.1} parent=1 // pred_fallthru
      _
    // Predicated region
    $region14: #{tpu_custom_call.1} parent=1 // pred_check
      _
    $region15: #{tpu_custom_call.1} parent=1 // pred_check_branch
      %36 = sbr.rel (0) target = $region17
    $region16: #{tpu_custom_call.1} parent=1 // pred_region
      %37 = dma.done [#allocation3], 128
    $region17: #{tpu_custom_call.1} parent=1 // pred_fallthru
      _
    // Predicated region
    $region18: #{tpu_custom_call.1} parent=1 // pred_check
      _
    $region19: #{tpu_custom_call.1} parent=1 // pred_check_branch
      %39 = sbr.rel (0) target = $region21
    $region20: #{tpu_custom_call.1} parent=1 // pred_region
      %40 = dma.done [#allocation6], 512
    $region21: #{tpu_custom_call.1} parent=1 // pred_fallthru
      _
    %v41 = vld [vmem:[#allocation2] sm:$0xff]
    %v42 = vld [vmem:[#allocation5] sm:$0xff]
    %v43 = vld [vmem:[#allocation5 + $0x8] sm:$0xff]
    %v44 = vld [vmem:[#allocation5 + $0x10] sm:$0xff]
    %v45 = vld [vmem:[#allocation5 + $0x18] sm:$0xff]
    %v46 = vld [vmem:[%s2] sm:$0x1]
    %v48 = vlaneseq
    %v49 = vshrl.u32 %v48, 7
    %v50 = vsub.s32 0, %v49
    %v51 = vrot.slane %v46, %v50
    %vm53 = vcmask 261120
    %v55 = vsel %vm53, %v41, 0
    %57 = vmatprep.subr.mxu0 0.0
    %58 = vmatpush1.msra.mxu0 %v42
    %59 = vmatprep.subr.mxu0 0.0
    %60 = vmatpush1.msra.mxu0 %v43
    %61 = vmatprep.subr.mxu0 0.0
    %62 = vmatpush1.msra.mxu0 %v44
    %63 = vmatprep.subr.mxu0 0.0
    %64 = vmatpush1.msra.mxu0 %v45
    %65 = vmatprep.subr.mxu0 0.0
    %66 = vmatpush1.msra.mxu0 0.0
    %67 = vmatprep.subr.mxu0 0.0
    %68 = vmatpush1.msra.mxu0 0.0
    %69 = vmatprep.subr.mxu0 0.0
    %70 = vmatpush1.msra.mxu0 0.0
    %71 = vmatprep.subr.mxu0 0.0
    %72 = vmatpush1.msra.mxu0 0.0
    %73 = vmatprep.subr.mxu0 0.0
    %74 = vmatpush1.msra.mxu0 0.0
    %75 = vmatprep.subr.mxu0 0.0
    %76 = vmatpush1.msra.mxu0 0.0
    %77 = vmatprep.subr.mxu0 0.0
    %78 = vmatpush1.msra.mxu0 0.0
    %79 = vmatprep.subr.mxu0 0.0
    %80 = vmatpush1.msra.mxu0 0.0
    %81 = vmatprep.subr.mxu0 0.0
    %82 = vmatpush1.msra.mxu0 0.0
    %83 = vmatprep.subr.mxu0 0.0
    %84 = vmatpush1.msra.mxu0 0.0
    %85 = vmatprep.subr.mxu0 0.0
    %86 = vmatpush1.msra.mxu0 0.0
    %87 = vmatprep.subr.mxu0 0.0
    %88 = vmatpush1.msra.mxu0 0.0
    %89 = vmatprep.subr.mxu0 0.0
    %90 = vmatpush1.msra.mxu0 0.0
    %91 = vmatprep.subr.mxu0 0.0
    %92 = vmatpush1.msra.mxu0 0.0
    %93 = vmatprep.subr.mxu0 0.0
    %94 = vmatpush1.msra.mxu0 0.0
    %95 = vmatprep.subr.mxu0 0.0
    %96 = vmatpush1.msra.mxu0 0.0
    %97 = vmatprep.subr.mxu0 0.0
    %98 = vmatpush1.msra.mxu0 0.0
    %99 = vmatprep.subr.mxu0 0.0
    %100 = vmatpush1.msra.mxu0 0.0
    %101 = vmatprep.subr.mxu0 0.0
    %102 = vmatpush1.msra.mxu0 0.0
    %103 = vmatprep.subr.mxu0 0.0
    %104 = vmatpush1.msra.mxu0 0.0
    %105 = vmatprep.subr.mxu0 0.0
    %106 = vmatpush1.msra.mxu0 0.0
    %107 = vmatprep.subr.mxu0 0.0
    %108 = vmatpush1.msra.mxu0 0.0
    %109 = vmatprep.subr.mxu0 0.0
    %110 = vmatpush1.msra.mxu0 0.0
    %111 = vmatprep.subr.mxu0 0.0
    %112 = vmatpush1.msra.mxu0 0.0
    %113 = vmatprep.subr.mxu0 0.0
    %114 = vmatpush1.msra.mxu0 0.0
    %115 = vmatprep.subr.mxu0 0.0
    %116 = vmatpush1.msra.mxu0 0.0
    %117 = vmatprep.subr.mxu0 0.0
    %118 = vmatpush1.msra.mxu0 0.0
    %119 = vmatprep.subr.mxu0 0.0
    %120 = vmatpush1.msra.mxu0 0.0
    %121 = vmatprep.mubr.f32.mxu0 0.0
    %122 = vmatmul.mubr.f32.gmra.mrb[0].mxu0 %v55
    %v123 = vpop.f32.mrb[0].mxu0
    %v124 = vadd.f32 %v51, %v123
    %v125 = vpop.f32.mrb[0].mxu0
    %126 = vdwg.mxu0
    %127 = vst [vmem:[#allocation7] sm:$0xff] %v124
    // Predicated region
    $region22: #{tpu_custom_call.1} parent=1 // pred_check
      _
    $region23: #{tpu_custom_call.1} parent=1 // pred_check_branch
      %129 = sbr.rel (0) target = $region25
    $region24: #{tpu_custom_call.1} parent=1 // pred_region
      %s131 = ssub.s32 128, 128
      %132 = vsyncadd [#allocation4], %s131
      %s134 = sshll.u32 [#allocation7], 4
      %s135 = int_to_ptr.vmem [resolvable:$true] %s134
      %137 = dma.vmem_to_hbm [thread:$0]  %s135, 128, %s3, [#allocation4]
    $region25: #{tpu_custom_call.1} parent=1 // pred_fallthru
      _
    // Predicated region
    $region26: #{tpu_custom_call.1} parent=1 // pred_check
      _
    $region27: #{tpu_custom_call.1} parent=1 // pred_check_branch
      %139 = sbr.rel (0) target = $region29
    $region28: #{tpu_custom_call.1} parent=1 // pred_region
      %140 = dma.done [#allocation4], 128
    $region29: #{tpu_custom_call.1} parent=1 // pred_fallthru
      _
    %141 = vsyncpa [#allocation3], 1
    %142 = vsyncpa [#allocation6], 1
    %143 = vsyncpa [#allocation4], 1

</llo_original>
